<compile_context>
chip_gen: v6e
topology: v6e:2x2x1
jax: 0.10.0
libtpu: 0.0.40
codegen_flags: <defaults>
</compile_context>

<pallas_src>
import jax
import jax.numpy as jnp
from jax.experimental import pallas as pl
from jax.experimental.pallas import tpu as pltpu

IN_FEATURES = 4
OUT_FEATURES = 1
LANE = 128            # TPU lane width (last-dim tiling unit)
MAX_TILE_B = 2048     # batch-lane tile; (4, 2048) f32 = 32 KiB per buffer


def _round_up(n, m):
    return ((n + m - 1) // m) * m


def linear_kernel(w_ref, b_ref, x_ref, o_ref):
    # w_ref: SMEM (IN,) f32 scalars, b_ref: SMEM (1,) f32 scalar
    # x_ref: VMEM (IN, TILE_B) f32  (features on sublanes, batch on lanes)
    # o_ref: VMEM (1, TILE_B) f32   (lane-dense output -> unmasked stores)
    x = x_ref[...]                                   # (IN, TILE_B)
    # Unrolled VPU multiply-adds; bias folded into the first term.
    acc = x[0:1, :] * w_ref[0] + b_ref[0]
    for i in range(1, IN_FEATURES):
        acc = acc + x[i:i + 1, :] * w_ref[i]
    o_ref[...] = acc


def dummy_model_forward(x, w, b, *, max_tile_b=MAX_TILE_B):
    """x: (B, 4) f32, w: (1, 4) f32 (PyTorch layout), b: (1,) f32 -> (B, 1) f32."""
    B = x.shape[0]

    # Wrapper-side layout plumbing: transpose to lane-dense (IN, B) and pad the
    # batch (lane) axis to a multiple of the tile size.
    x_t = jnp.asarray(x, jnp.float32).T              # (IN, B)
    tile_b = min(max_tile_b, _round_up(B, LANE))
    pad_b = _round_up(B, tile_b)
    if pad_b != B:
        x_t = jnp.pad(x_t, ((0, 0), (0, pad_b - B)))
    num_tiles = pad_b // tile_b

    out_t = pl.pallas_call(
        linear_kernel,
        out_shape=jax.ShapeDtypeStruct((OUT_FEATURES, pad_b), jnp.float32),
        grid=(num_tiles,),
        in_specs=[
            # 4 weights + 1 bias as SMEM scalars (no padded VMEM tiles / DMAs).
            pl.BlockSpec(memory_space=pltpu.MemorySpace.SMEM),
            pl.BlockSpec(memory_space=pltpu.MemorySpace.SMEM),
            # Lane-dense x tile; full feature dim on sublanes.
            pl.BlockSpec((IN_FEATURES, tile_b), lambda i: (0, i)),
        ],
        out_specs=pl.BlockSpec((OUT_FEATURES, tile_b), lambda i: (0, i)),
        compiler_params=pltpu.CompilerParams(
            dimension_semantics=("parallel",),   # shardable across TCs (v7x)
        ),
    )(
        jnp.asarray(w, jnp.float32).reshape(IN_FEATURES),   # (4,)
        jnp.asarray(b, jnp.float32).reshape(OUT_FEATURES),  # (1,)
        x_t,
    )

    # Un-pad and transpose back to PyTorch's (B, OUT) convention.
    return out_t[:, :B].T


def init_params(key):
    # Deterministic init mimicking nn.Linear's uniform(-1/sqrt(in), 1/sqrt(in)).
    k_w, k_b = jax.random.split(key)
    bound = 1.0 / jnp.sqrt(jnp.float32(IN_FEATURES))
    w = jax.random.uniform(
        k_w, (OUT_FEATURES, IN_FEATURES), jnp.float32, -bound, bound
    )
    b = jax.random.uniform(k_b, (OUT_FEATURES,), jnp.float32, -bound, bound)
    return w, b


if __name__ == "__main__":
    key = jax.random.PRNGKey(0)
    k_x, k_p = jax.random.split(key)

    B = 8  # small batch, consistent with the module's (B, 4) input
    x = jax.random.normal(k_x, (B, IN_FEATURES), jnp.float32)
    w, b = init_params(k_p)

    out = dummy_model_forward(x, w, b)
    out = jax.block_until_ready(out)

    # Reference check in plain JAX (same math as PyTorch nn.Linear).
    ref = x @ w.T + b
    assert out.shape == (B, OUT_FEATURES)
    assert jnp.allclose(out, ref, atol=1e-5, rtol=1e-5)

    print("KERNEL_OK")
</pallas_src>

<mosaic_0001>
module attributes {stable_mosaic.version = 11 : i64} {
  func.func @linear_kernel(%arg0: i32, %arg1: memref<4xf32, #tpu.memory_space<smem>>, %arg2: memref<1xf32, #tpu.memory_space<smem>>, %arg3: memref<4x128xf32, #tpu.memory_space<vmem>>, %arg4: memref<1x128xf32, #tpu.memory_space<vmem>>) attributes {dimension_semantics = [#tpu.dimension_semantics<parallel>], iteration_bounds = array<i64: 1>, scalar_prefetch = 0 : i64, scratch_operands = 0 : i64, tpu.core_type = #tpu.core_type<tc>, window_params = [{transform_indices = @transform_0, window_bounds = array<i64: 4>}, {transform_indices = @transform_1, window_bounds = array<i64: 1>}, {transform_indices = @transform_2, window_bounds = array<i64: 4, 128>}, {transform_indices = @transform_3, window_bounds = array<i64: 1, 128>}]} {
    %c0 = arith.constant 0 : index
    %c0_0 = arith.constant 0 : index
    %0 = vector.load %arg3[%c0, %c0_0] : memref<4x128xf32, #tpu.memory_space<vmem>>, vector<4x128xf32>
    %1 = vector.extract_strided_slice %0 {offsets = [0, 0], sizes = [1, 128], strides = [1, 1]} : vector<4x128xf32> to vector<1x128xf32>
    %c0_1 = arith.constant 0 : index
    %2 = memref.load %arg1[%c0_1] : memref<4xf32, #tpu.memory_space<smem>>
    %3 = vector.broadcast %2 : f32 to vector<1x128xf32>
    %4 = arith.mulf %1, %3 : vector<1x128xf32>
    %c0_2 = arith.constant 0 : index
    %5 = memref.load %arg2[%c0_2] : memref<1xf32, #tpu.memory_space<smem>>
    %6 = vector.broadcast %5 : f32 to vector<1x128xf32>
    %7 = arith.addf %4, %6 : vector<1x128xf32>
    %8 = vector.extract_strided_slice %0 {offsets = [1, 0], sizes = [1, 128], strides = [1, 1]} : vector<4x128xf32> to vector<1x128xf32>
    %c1 = arith.constant 1 : index
    %9 = memref.load %arg1[%c1] : memref<4xf32, #tpu.memory_space<smem>>
    %10 = vector.broadcast %9 : f32 to vector<1x128xf32>
    %11 = arith.mulf %8, %10 : vector<1x128xf32>
    %12 = arith.addf %7, %11 : vector<1x128xf32>
    %13 = vector.extract_strided_slice %0 {offsets = [2, 0], sizes = [1, 128], strides = [1, 1]} : vector<4x128xf32> to vector<1x128xf32>
    %c2 = arith.constant 2 : index
    %14 = memref.load %arg1[%c2] : memref<4xf32, #tpu.memory_space<smem>>
    %15 = vector.broadcast %14 : f32 to vector<1x128xf32>
    %16 = arith.mulf %13, %15 : vector<1x128xf32>
    %17 = arith.addf %12, %16 : vector<1x128xf32>
    %18 = vector.extract_strided_slice %0 {offsets = [3, 0], sizes = [1, 128], strides = [1, 1]} : vector<4x128xf32> to vector<1x128xf32>
    %c3 = arith.constant 3 : index
    %19 = memref.load %arg1[%c3] : memref<4xf32, #tpu.memory_space<smem>>
    %20 = vector.broadcast %19 : f32 to vector<1x128xf32>
    %21 = arith.mulf %18, %20 : vector<1x128xf32>
    %22 = arith.addf %17, %21 : vector<1x128xf32>
    %c0_3 = arith.constant 0 : index
    %c0_4 = arith.constant 0 : index
    %23 = vector.load %arg4[%c0_3, %c0_4] : memref<1x128xf32, #tpu.memory_space<vmem>>, vector<1x128xf32>
    tpu.vector_store %arg4[%c0_3, %c0_4], %22 {strides = array<i32>} : memref<1x128xf32, #tpu.memory_space<vmem>>, vector<1x128xf32>,
    return
  }
  func.func @transform_0(%arg0: i32) -> i32 {
    %c0_i32 = arith.constant 0 : i32
    %c0_i32_0 = arith.constant 0 : i32
    return %c0_i32 : i32
  }
  func.func @transform_1(%arg0: i32) -> i32 {
    %c0_i32 = arith.constant 0 : i32
    %c0_i32_0 = arith.constant 0 : i32
    return %c0_i32 : i32
  }
  func.func @transform_2(%arg0: i32) -> (i32, i32) {
    %c0_i32 = arith.constant 0 : i32
    %c0_i32_0 = arith.constant 0 : i32
    return %c0_i32, %arg0 : i32, i32
  }
  func.func @transform_3(%arg0: i32) -> (i32, i32) {
    %c0_i32 = arith.constant 0 : i32
    %c0_i32_0 = arith.constant 0 : i32
    return %c0_i32, %arg0 : i32, i32
  }
}

</mosaic_0001>

<llo_original>
// kernel: tpu_custom_call.1
$region0: #{tpu_custom_call.1}
  #allocation0 [shape = 'u32[]', space=smem, size = 0x4, offset = 0x4, fixed_abs, tag = 'smem constant byte address 0x4 - core index']
  #allocation1 [shape = 'u32[144,128]{1,0:T(1,128)}', space=vmem, size = 0x12000, scoped, tag = 'internal scratch']
  #allocation2 [shape = 'f32[1]{0:T(128)S(6)}', space=smem, size = 0x200, scoped, tag = 'scoped memory for tpu_custom_call.1']
  %s0 = inlined_call_operand.vmem [shape: f32[4], index: 0, kind: input, shape index: {}]
  %s1 = inlined_call_operand.<no memory space> [shape: f32[1], index: 1, kind: input, shape index: {}]
  %s2 = inlined_call_operand.hbm [shape: f32[4,128], index: 2, kind: input, shape index: {}]
  %s3 = inlined_call_operand.hbm [shape: f32[1,128], index: 3, kind: output, shape index: {}]
  %s4 = sld [smem:[#allocation0]]
  $region30: #{tpu_custom_call.1} parent=0
    _
  %s6 = ssub.s32 1, %s4
  %s7 = scalar_select 0, %s6, %s4
  %8 = sst [smem:[#allocation2]] %s1
  $region1: #{tpu_custom_call.1} parent=0
    #allocation3 [shape = 'u8[512]{0}', space=smem, size = 0x200, scoped, tag = 'input window, operand 0, single buffered']
    #allocation4 [shape = 's32[1]{0}', space=sflag, size = 0x4, scoped, tag = 'scoped memory for tpu_custom_call.1']
    #allocation5 [shape = 's32[1]{0}', space=sflag, size = 0x4, scoped, tag = 'scoped memory for tpu_custom_call.1']
    #allocation6 [shape = 's32[1]{0}', space=sflag, size = 0x4, scoped, tag = 'scoped memory for tpu_custom_call.1']
    #allocation7 [shape = 'u8[2048]{0}', space=vmem, size = 0x800, scoped, tag = 'input window, operand 2, single buffered']
    #allocation8 [shape = 'u8[512]{0}', space=vmem, size = 0x400, scoped, tag = 'output window, operand 0, single buffered']
    %9 = vsyncpa [#allocation6], 0
    %10 = vsyncpa [#allocation4], 0
    %11 = vsyncpa [#allocation5], 0
    // Predicated region
    $region2: #{tpu_custom_call.1} parent=1 // pred_check
      _
    $region3: #{tpu_custom_call.1} parent=1 // pred_check_branch
      %13 = sbr.rel (0) target = $region5
    $region4: #{tpu_custom_call.1} parent=1 // pred_region
      %s15 = ssub.s32 16, 16
      %16 = vsyncadd [#allocation6], %s15
      %s18 = sshll.u32 %s0, 4
      %s19 = int_to_ptr.vmem [resolvable:$true] %s18
      %21 = dma.vmem_to_smem %s19, 16, [#allocation3], [#allocation6]
    $region5: #{tpu_custom_call.1} parent=1 // pred_fallthru
      _
    // Predicated region
    $region6: #{tpu_custom_call.1} parent=1 // pred_check
      _
    $region7: #{tpu_custom_call.1} parent=1 // pred_check_branch
      %23 = sbr.rel (0) target = $region9
    $region8: #{tpu_custom_call.1} parent=1 // pred_region
      _
    $region9: #{tpu_custom_call.1} parent=1 // pred_fallthru
      _
    // Predicated region
    $region10: #{tpu_custom_call.1} parent=1 // pred_check
      _
    $region11: #{tpu_custom_call.1} parent=1 // pred_check_branch
      %25 = sbr.rel (0) target = $region13
    $region12: #{tpu_custom_call.1} parent=1 // pred_region
      %s27 = ssub.s32 64, 64
      %28 = vsyncadd [#allocation4], %s27
      %s30 = sshll.u32 [#allocation7], 4
      %s31 = int_to_ptr.vmem [resolvable:$true] %s30
      %33 = dma.hbm_to_vmem [thread:$0]  %s2, 64, %s31, [#allocation4]
    $region13: #{tpu_custom_call.1} parent=1 // pred_fallthru
      _
    // Predicated region
    $region14: #{tpu_custom_call.1} parent=1 // pred_check
      _
    $region15: #{tpu_custom_call.1} parent=1 // pred_check_branch
      %35 = sbr.rel (0) target = $region17
    $region16: #{tpu_custom_call.1} parent=1 // pred_region
      %36 = dma.done [#allocation6], 16
    $region17: #{tpu_custom_call.1} parent=1 // pred_fallthru
      _
    // Predicated region
    $region18: #{tpu_custom_call.1} parent=1 // pred_check
      _
    $region19: #{tpu_custom_call.1} parent=1 // pred_check_branch
      %38 = sbr.rel (0) target = $region21
    $region20: #{tpu_custom_call.1} parent=1 // pred_region
      %39 = dma.done [#allocation4], 64
    $region21: #{tpu_custom_call.1} parent=1 // pred_fallthru
      _
    %40 = sfence
    %v41 = vld [vmem:[#allocation7] sm:$0xf]
    %s42 = sld [smem:[#allocation3]]
    %v43 = vstv %s42
    %v44 = vmul.f32 %v41, %v43
    %s45 = sld [smem:[#allocation2]]
    %v46 = vstv %s45
    %v47 = vadd.f32 %v44, %v46
    %s48 = sld [smem:[#allocation3 + $0x1]]
    %v49 = vstv %s48
    %v50 = vmul.f32 %v41, %v49
    %v52 = vrot.slane %v50, 1
    %v54 = vadd.f32 %v47, %v52
    %s55 = sld [smem:[#allocation3 + $0x2]]
    %v56 = vstv %s55
    %v57 = vmul.f32 %v41, %v56
    %v59 = vrot.slane %v57, 2
    %v61 = vadd.f32 %v54, %v59
    %s62 = sld [smem:[#allocation3 + $0x3]]
    %v63 = vstv %s62
    %v64 = vmul.f32 %v41, %v63
    %v66 = vrot.slane %v64, 3
    %v68 = vadd.f32 %v61, %v66
    %69 = vst [vmem:[#allocation8] sm:$0x1] %v68
    // Predicated region
    $region22: #{tpu_custom_call.1} parent=1 // pred_check
      _
    $region23: #{tpu_custom_call.1} parent=1 // pred_check_branch
      %71 = sbr.rel (0) target = $region25
    $region24: #{tpu_custom_call.1} parent=1 // pred_region
      %s73 = ssub.s32 16, 16
      %74 = vsyncadd [#allocation5], %s73
      %s76 = sshll.u32 [#allocation8], 4
      %s77 = int_to_ptr.vmem [resolvable:$true] %s76
      %79 = dma.vmem_to_hbm [thread:$0]  %s77, 16, %s3, [#allocation5]
    $region25: #{tpu_custom_call.1} parent=1 // pred_fallthru
      _
    // Predicated region
    $region26: #{tpu_custom_call.1} parent=1 // pred_check
      _
    $region27: #{tpu_custom_call.1} parent=1 // pred_check_branch
      %81 = sbr.rel (0) target = $region29
    $region28: #{tpu_custom_call.1} parent=1 // pred_region
      %82 = dma.done [#allocation5], 16
    $region29: #{tpu_custom_call.1} parent=1 // pred_fallthru
      _
    %83 = vsyncpa [#allocation4], 1
    %84 = vsyncpa [#allocation5], 1
    %85 = vsyncpa [#allocation6], 1

</llo_original>
